<compile_context>
chip_gen: v5e
topology: v5e:2x2
jax: 0.10.0
libtpu: 0.0.40
codegen_flags: <defaults>
</compile_context>

<pallas_src>
import jax
import jax.numpy as jnp
from jax.experimental import pallas as pl
from jax.experimental.pallas import tpu as pltpu


def _make_iou_kernel(rows, cols, tr, tc):
    """Builds the kernel for static (rows, cols, tr, tc)."""
    mask_rows = (rows % tr) != 0
    mask_cols = (cols % tc) != 0

    def kernel(pred_ref, target_ref, out_ref, inter_acc, sum_acc):
        i = pl.program_id(0)              # row-block index (parallel)
        j = pl.program_id(1)              # col-block index (reduction)
        last_j = pl.num_programs(1) - 1

        @pl.when(j == 0)
        def _init():
            inter_acc[...] = jnp.zeros_like(inter_acc)
            sum_acc[...] = jnp.zeros_like(sum_acc)

        x = pred_ref[...].astype(jnp.float32)
        # sigmoid(x) == 0.5 * tanh(0.5 * x) + 0.5 : one EUP op + 2 VALU ops,
        # avoids jax.nn.sigmoid's exp + full-precision divide.
        p = 0.5 * jnp.tanh(0.5 * x) + 0.5
        t = target_ref[...].astype(jnp.float32)

        def _accumulate(pp, tt):
            inter_acc[...] += jnp.sum(pp * tt, axis=1, keepdims=True)
            # single cross-lane reduction for the union term
            sum_acc[...] += jnp.sum(pp + tt, axis=1, keepdims=True)

        if mask_cols:
            # Only the ragged last column block pays for iota/compare/select.
            @pl.when(j < last_j)
            def _full_block():
                _accumulate(p, t)

            @pl.when(j == last_j)
            def _ragged_block():
                col_ids = j * tc + jax.lax.broadcasted_iota(jnp.int32, (tr, tc), 1)
                valid = col_ids < cols
                _accumulate(jnp.where(valid, p, 0.0), jnp.where(valid, t, 0.0))
        else:
            _accumulate(p, t)

        @pl.when(j == last_j)
        def _finalize():
            inter = inter_acc[...]
            union = sum_acc[...] - inter
            iou = 1.0 - inter / union                       # (tr, 1)
            if mask_rows:
                row_ids = i * tr + jax.lax.broadcasted_iota(jnp.int32, (tr, 1), 0)
                iou = jnp.where(row_ids < rows, iou, 0.0)
            # one scalar partial per row block, broadcast into a lane-dense tile
            out_ref[...] = jnp.full((1, 8, 128), jnp.sum(iou), dtype=jnp.float32)

    return kernel


def iou_loss(pred, target, *, pipeline_vmem_budget_bytes=None, input_buffer_count=2):
    """Pallas equivalent of IOU().forward(pred, target) for NCHW inputs."""
    assert pred.shape == target.shape and pred.ndim == 4
    b, c, h, w = pred.shape
    rows, cols = b * c, h * w

    # Glue only: flatten spatial dims (no dtype upcast here; kernel casts after load).
    pred2d = pred.reshape(rows, cols)
    target2d = target.reshape(rows, cols)

    p_item = jnp.dtype(pred2d.dtype).itemsize
    t_item = jnp.dtype(target2d.dtype).itemsize
    bytes_per_elem = p_item + t_item              # both operands, per (row, col) element
    min_item = min(p_item, t_item)
    row_align = max(8, 32 // min_item)            # 8 (f32) / 16 (bf16) / 32 (int8)

    # Physical VMEM (conservative fallback = v7x's 64 MiB per TensorCore).
    vmem_cap = 64 * 1024 * 1024
    try:
        info = pltpu.get_tpu_info()
        vmem_cap = int(getattr(info, "vmem_capacity_bytes", vmem_cap))
    except Exception:
        pass

    if pipeline_vmem_budget_bytes is None:
        # Total bytes across all pipelined input buffers; leaves headroom on v7x.
        pipeline_vmem_budget_bytes = min(48 * 1024 * 1024, (vmem_cap * 3) // 4)

    max_tile_elems = max(
        row_align * 128,
        pipeline_vmem_budget_bytes // (input_buffer_count * bytes_per_elem),
    )

    # --- tile sizing ---
    if cols <= 128 or cols * row_align <= max_tile_elems:
        tc = cols                                  # full spatial extent
    else:
        tc = max(128, ((max_tile_elems // row_align) // 128) * 128)
    tr = max(row_align, ((max_tile_elems // tc) // row_align) * row_align)
    if tr >= rows:
        tr = rows                                  # full row extent (always legal)
        # Megacore (v7x): split the parallel row axis into >=2 blocks when possible.
        half_aligned = pl.cdiv(pl.cdiv(rows, 2), row_align) * row_align
        if half_aligned < rows:
            tr = half_aligned

    nrb = pl.cdiv(rows, tr)
    ncb = pl.cdiv(cols, tc)

    # --- VMEM limit derived from actual tile bytes (both operands) ---
    tile_bytes = tr * tc * bytes_per_elem
    scratch_bytes = 2 * tr * 128 * 4               # (tr,1) f32 scratch pads lanes to 128
    out_bytes = 2 * 8 * 128 * 4
    vmem_limit = input_buffer_count * tile_bytes + scratch_bytes + out_bytes + (4 << 20)
    vmem_limit = max(vmem_limit, 16 << 20)
    vmem_limit = min(vmem_limit, vmem_cap - (4 << 20))

    kernel = _make_iou_kernel(rows, cols, tr, tc)

    cost = pl.CostEstimate(
        flops=6 * rows * cols,
        transcendentals=rows * cols,
        bytes_accessed=rows * cols * bytes_per_elem + nrb * 8 * 128 * 4,
    )

    spec_kwargs = {}
    if input_buffer_count != 2:
        spec_kwargs = dict(pipeline_mode=pl.Buffered(input_buffer_count))
    in_specs = [
        pl.BlockSpec((tr, tc), lambda i, j: (i, j), **spec_kwargs),
        pl.BlockSpec((tr, tc), lambda i, j: (i, j), **spec_kwargs),
    ]

    partials = pl.pallas_call(
        kernel,
        out_shape=jax.ShapeDtypeStruct((nrb, 8, 128), jnp.float32),
        grid_spec=pltpu.PrefetchScalarGridSpec(
            num_scalar_prefetch=0,
            grid=(nrb, ncb),
            in_specs=in_specs,
            out_specs=pl.BlockSpec((1, 8, 128), lambda i, j: (i, 0, 0)),
            scratch_shapes=[
                pltpu.VMEM((tr, 1), jnp.float32),   # inter accumulator
                pltpu.VMEM((tr, 1), jnp.float32),   # sum(p + t) accumulator
            ],
        ),
        compiler_params=pltpu.CompilerParams(
            dimension_semantics=("parallel", "arbitrary"),
            vmem_limit_bytes=int(vmem_limit),
        ),
        cost_estimate=cost,
    )(pred2d, target2d)

    # One scalar partial per row block lives at [:, 0, 0]; finish with a trivial sum.
    return jnp.sum(partials[:, 0, 0]) / jnp.float32(rows)


def _iou_ref(pred, target):
    # pure-JAX reference mirroring the PyTorch module
    p = jax.nn.sigmoid(pred.astype(jnp.float32))
    t = target.astype(jnp.float32)
    inter = jnp.sum(p * t, axis=(2, 3))
    union = jnp.sum(p + t, axis=(2, 3)) - inter
    return jnp.mean(1.0 - inter / union)


def _check(pred, target, **kw):
    out = jax.block_until_ready(iou_loss(pred, target, **kw))
    ref = jax.block_until_ready(_iou_ref(pred, target))
    assert jnp.allclose(out, ref, rtol=1e-4, atol=1e-5), (out, ref)


if __name__ == "__main__":
    key = jax.random.PRNGKey(0)
    k1, k2, k3, k4, k5, k6 = jax.random.split(key, 6)

    # Main case: matches the module spec shapes.
    B, C, H, W = 2, 4, 16, 16
    pred = jax.random.normal(k1, (B, C, H, W), dtype=jnp.float32)              # logits
    target = (jax.random.uniform(k2, (B, C, H, W)) > 0.5).astype(jnp.float32)  # binary mask
    _check(pred, target)

    # Row tiling + last-row-block masking (rows=12 -> megacore split gives tr=8, nrb=2).
    pred2 = jax.random.normal(k3, (3, 4, 32, 32), dtype=jnp.float32)
    target2 = (jax.random.uniform(k4, (3, 4, 32, 32)) > 0.5).astype(jnp.float32)
    _check(pred2, target2)

    # Col tiling + ragged last col block (cols=2560, small budget forces tc=2048).
    pred3 = jax.random.normal(k5, (2, 4, 32, 80), dtype=jnp.float32)
    target3 = (jax.random.uniform(k6, (2, 4, 32, 80)) > 0.5).astype(jnp.float32)
    _check(pred3, target3, pipeline_vmem_budget_bytes=256 * 1024)

    # bf16 inputs: DMA'd as bf16, cast to f32 inside the kernel.
    _check(pred.astype(jnp.bfloat16), target.astype(jnp.bfloat16))

    # int8 binary target: DMA'd as 1 byte/elem, cast to f32 in-kernel (bandwidth win).
    _check(pred, target.astype(jnp.int8))

    print("KERNEL_OK")
</pallas_src>

<mosaic_0001>
module attributes {stable_mosaic.version = 11 : i64} {
  func.func @kernel(%arg0: i32, %arg1: i32, %arg2: memref<8x256xf32, #tpu.memory_space<vmem>>, %arg3: memref<8x256xf32, #tpu.memory_space<vmem>>, %arg4: memref<1x8x128xf32, #tpu.memory_space<vmem>>, %arg5: memref<8x1xf32, #tpu.memory_space<vmem>>, %arg6: memref<8x1xf32, #tpu.memory_space<vmem>>) attributes {dimension_semantics = [#tpu.dimension_semantics<parallel>, #tpu.dimension_semantics<arbitrary>], iteration_bounds = array<i64: 1, 1>, scalar_prefetch = 0 : i64, scratch_operands = 2 : i64, tpu.core_type = #tpu.core_type<tc>, window_params = [{transform_indices = @transform_0, window_bounds = array<i64: 8, 256>}, {transform_indices = @transform_1, window_bounds = array<i64: 8, 256>}, {transform_indices = @transform_2, window_bounds = array<i64: 1, 8, 128>}]} {
    %c0_i32 = arith.constant 0 : i32
    %0 = arith.cmpi eq, %arg1, %c0_i32 : i32
    %1 = arith.extui %0 : i1 to i32
    %c0_i32_0 = arith.constant 0 : i32
    %2 = arith.cmpi ne, %1, %c0_i32_0 : i32
    scf.if %2 {
      %cst_18 = arith.constant 0.000000e+00 : f32
      %27 = vector.broadcast %cst_18 : f32 to vector<8x1xf32>
      %c0_19 = arith.constant 0 : index
      %c0_20 = arith.constant 0 : index
      %28 = vector.load %arg5[%c0_19, %c0_20] : memref<8x1xf32, #tpu.memory_space<vmem>>, vector<8x1xf32>
      tpu.vector_store %arg5[%c0_19, %c0_20], %27 {strides = array<i32>} : memref<8x1xf32, #tpu.memory_space<vmem>>, vector<8x1xf32>,
      %cst_21 = arith.constant 0.000000e+00 : f32
      %29 = vector.broadcast %cst_21 : f32 to vector<8x1xf32>
      %c0_22 = arith.constant 0 : index
      %c0_23 = arith.constant 0 : index
      %30 = vector.load %arg6[%c0_22, %c0_23] : memref<8x1xf32, #tpu.memory_space<vmem>>, vector<8x1xf32>
      tpu.vector_store %arg6[%c0_22, %c0_23], %29 {strides = array<i32>} : memref<8x1xf32, #tpu.memory_space<vmem>>, vector<8x1xf32>,
    } else {
    }
    %c0 = arith.constant 0 : index
    %c0_1 = arith.constant 0 : index
    %3 = vector.load %arg2[%c0, %c0_1] : memref<8x256xf32, #tpu.memory_space<vmem>>, vector<8x256xf32>
    %cst = arith.constant 5.000000e-01 : f32
    %4 = vector.broadcast %cst : f32 to vector<8x256xf32>
    %5 = arith.mulf %4, %3 : vector<8x256xf32>
    %6 = math.tanh %5 : vector<8x256xf32>
    %cst_2 = arith.constant 5.000000e-01 : f32
    %7 = vector.broadcast %cst_2 : f32 to vector<8x256xf32>
    %8 = arith.mulf %7, %6 : vector<8x256xf32>
    %cst_3 = arith.constant 5.000000e-01 : f32
    %9 = vector.broadcast %cst_3 : f32 to vector<8x256xf32>
    %10 = arith.addf %8, %9 : vector<8x256xf32>
    %c0_4 = arith.constant 0 : index
    %c0_5 = arith.constant 0 : index
    %11 = vector.load %arg3[%c0_4, %c0_5] : memref<8x256xf32, #tpu.memory_space<vmem>>, vector<8x256xf32>
    %c0_6 = arith.constant 0 : index
    %c0_7 = arith.constant 0 : index
    %12 = vector.load %arg5[%c0_6, %c0_7] : memref<8x1xf32, #tpu.memory_space<vmem>>, vector<8x1xf32>
    %13 = arith.mulf %10, %11 : vector<8x256xf32>
    %cst_8 = arith.constant dense<0.000000e+00> : vector<8xf32>
    %14 = vector.multi_reduction <add>, %13, %cst_8 [1] : vector<8x256xf32> to vector<8xf32>
    %15 = vector.shape_cast %14 : vector<8xf32> to vector<8x1xf32>
    %16 = arith.addf %12, %15 : vector<8x1xf32>
    %c0_9 = arith.constant 0 : index
    %c0_10 = arith.constant 0 : index
    %17 = vector.load %arg5[%c0_9, %c0_10] : memref<8x1xf32, #tpu.memory_space<vmem>>, vector<8x1xf32>
    tpu.vector_store %arg5[%c0_9, %c0_10], %16 {strides = array<i32>} : memref<8x1xf32, #tpu.memory_space<vmem>>, vector<8x1xf32>,
    %c0_11 = arith.constant 0 : index
    %c0_12 = arith.constant 0 : index
    %18 = vector.load %arg6[%c0_11, %c0_12] : memref<8x1xf32, #tpu.memory_space<vmem>>, vector<8x1xf32>
    %19 = arith.addf %10, %11 : vector<8x256xf32>
    %cst_13 = arith.constant dense<0.000000e+00> : vector<8xf32>
    %20 = vector.multi_reduction <add>, %19, %cst_13 [1] : vector<8x256xf32> to vector<8xf32>
    %21 = vector.shape_cast %20 : vector<8xf32> to vector<8x1xf32>
    %22 = arith.addf %18, %21 : vector<8x1xf32>
    %c0_14 = arith.constant 0 : index
    %c0_15 = arith.constant 0 : index
    %23 = vector.load %arg6[%c0_14, %c0_15] : memref<8x1xf32, #tpu.memory_space<vmem>>, vector<8x1xf32>
    tpu.vector_store %arg6[%c0_14, %c0_15], %22 {strides = array<i32>} : memref<8x1xf32, #tpu.memory_space<vmem>>, vector<8x1xf32>,
    %c0_i32_16 = arith.constant 0 : i32
    %24 = arith.cmpi eq, %arg1, %c0_i32_16 : i32
    %25 = arith.extui %24 : i1 to i32
    %c0_i32_17 = arith.constant 0 : i32
    %26 = arith.cmpi ne, %25, %c0_i32_17 : i32
    scf.if %26 {
      %c0_18 = arith.constant 0 : index
      %c0_19 = arith.constant 0 : index
      %27 = vector.load %arg5[%c0_18, %c0_19] : memref<8x1xf32, #tpu.memory_space<vmem>>, vector<8x1xf32>
      %c0_20 = arith.constant 0 : index
      %c0_21 = arith.constant 0 : index
      %28 = vector.load %arg6[%c0_20, %c0_21] : memref<8x1xf32, #tpu.memory_space<vmem>>, vector<8x1xf32>
      %29 = arith.subf %28, %27 : vector<8x1xf32>
      %30 = arith.divf %27, %29 : vector<8x1xf32>
      %cst_22 = arith.constant 1.000000e+00 : f32
      %31 = vector.broadcast %cst_22 : f32 to vector<8x1xf32>
      %32 = arith.subf %31, %30 : vector<8x1xf32>
      %33 = vector.shape_cast %32 : vector<8x1xf32> to vector<1x8x1xf32>
      %cst_23 = arith.constant dense<0.000000e+00> : vector<1xf32>
      %34 = vector.multi_reduction <add>, %33, %cst_23 [1, 2] : vector<1x8x1xf32> to vector<1xf32>
      %35 = vector.shape_cast %34 : vector<1xf32> to vector<1x1x1xf32>
      %36 = vector.extract %35[0, 0, 0] : f32 from vector<1x1x1xf32>
      %37 = vector.broadcast %36 : f32 to vector<1x8x128xf32>
      %c0_24 = arith.constant 0 : index
      %c0_25 = arith.constant 0 : index
      %c0_26 = arith.constant 0 : index
      %38 = vector.load %arg4[%c0_24, %c0_25, %c0_26] : memref<1x8x128xf32, #tpu.memory_space<vmem>>, vector<1x8x128xf32>
      tpu.vector_store %arg4[%c0_24, %c0_25, %c0_26], %37 {strides = array<i32>} : memref<1x8x128xf32, #tpu.memory_space<vmem>>, vector<1x8x128xf32>,
    } else {
    }
    return
  }
  func.func @transform_0(%arg0: i32, %arg1: i32) -> (i32, i32) {
    %c0_i32 = arith.constant 0 : i32
    return %arg0, %arg1 : i32, i32
  }
  func.func @transform_1(%arg0: i32, %arg1: i32) -> (i32, i32) {
    %c0_i32 = arith.constant 0 : i32
    return %arg0, %arg1 : i32, i32
  }
  func.func @transform_2(%arg0: i32, %arg1: i32) -> (i32, i32, i32) {
    %c0_i32 = arith.constant 0 : i32
    %c0_i32_0 = arith.constant 0 : i32
    %c0_i32_1 = arith.constant 0 : i32
    return %arg0, %c0_i32, %c0_i32_0 : i32, i32, i32
  }
}

</mosaic_0001>

<llo_original>
// kernel: tpu_custom_call.1
$region0: #{tpu_custom_call.1}
  #allocation0 [shape = 'u32[]', space=smem, size = 0x4, offset = 0x4, fixed_abs, tag = 'smem constant byte address 0x4 - core index']
  #allocation1 [shape = 'u32[72,128]{1,0:T(1,128)}', space=vmem, size = 0x9000, scoped, tag = 'internal scratch']
  #allocation2 [shape = 'f32[8,1]{1,0:T(8,128)}', space=vmem, size = 0x1000, scoped, tag = 'scratch operand']
  #allocation3 [shape = 'f32[8,1]{1,0:T(8,128)}', space=vmem, size = 0x1000, scoped, tag = 'scratch operand']
  %s0 = inlined_call_operand.hbm [shape: f32[8,256], index: 0, kind: input, shape index: {}]
  %s1 = inlined_call_operand.hbm [shape: f32[8,256], index: 1, kind: input, shape index: {}]
  %s2 = inlined_call_operand.hbm [shape: f32[1,8,128], index: 2, kind: output, shape index: {}]
  %s3 = sld [smem:[#allocation0]]
  $region34: #{tpu_custom_call.1} parent=0
    _
  %s5 = ssub.s32 1, %s3
  %s6 = scalar_select 0, %s5, %s3
  $region1: #{tpu_custom_call.1} parent=0
    #allocation4 [shape = 'u8[8192]{0}', space=vmem, size = 0x2000, scoped, tag = 'input window, operand 0, single buffered']
    #allocation5 [shape = 's32[1]{0}', space=sflag, size = 0x4, scoped, tag = 'scoped memory for tpu_custom_call.1']
    #allocation6 [shape = 's32[1]{0}', space=sflag, size = 0x4, scoped, tag = 'scoped memory for tpu_custom_call.1']
    #allocation7 [shape = 'u8[8192]{0}', space=vmem, size = 0x2000, scoped, tag = 'input window, operand 1, single buffered']
    #allocation8 [shape = 's32[1]{0}', space=sflag, size = 0x4, scoped, tag = 'scoped memory for tpu_custom_call.1']
    #allocation9 [shape = 'u8[4096]{0}', space=vmem, size = 0x1000, scoped, tag = 'output window, operand 0, single buffered']
    %7 = vsyncpa [#allocation5], 0
    %8 = vsyncpa [#allocation8], 0
    %9 = vsyncpa [#allocation6], 0
    // Predicated region
    $region2: #{tpu_custom_call.1} parent=1 // pred_check
      _
    $region3: #{tpu_custom_call.1} parent=1 // pred_check_branch
      %11 = sbr.rel (0) target = $region5
    $region4: #{tpu_custom_call.1} parent=1 // pred_region
      %13 = vsyncadd [#allocation5], 0
      %s15 = sshll.u32 %s0, 4
      %s16 = int_to_ptr.hbm [resolvable:$true] %s15
      %s17 = sshll.u32 [#allocation4], 4
      %s18 = int_to_ptr.vmem [resolvable:$true] %s17
      %20 = dma.hbm_to_vmem [thread:$0]  %s16, 256, %s18, [#allocation5]
    $region5: #{tpu_custom_call.1} parent=1 // pred_fallthru
      _
    // Predicated region
    $region6: #{tpu_custom_call.1} parent=1 // pred_check
      _
    $region7: #{tpu_custom_call.1} parent=1 // pred_check_branch
      %22 = sbr.rel (0) target = $region9
    $region8: #{tpu_custom_call.1} parent=1 // pred_region
      %24 = vsyncadd [#allocation8], 0
      %s26 = sshll.u32 %s1, 4
      %s27 = int_to_ptr.hbm [resolvable:$true] %s26
      %s28 = sshll.u32 [#allocation7], 4
      %s29 = int_to_ptr.vmem [resolvable:$true] %s28
      %31 = dma.hbm_to_vmem [thread:$0]  %s27, 256, %s29, [#allocation8]
    $region9: #{tpu_custom_call.1} parent=1 // pred_fallthru
      _
    // Predicated region
    $region10: #{tpu_custom_call.1} parent=1 // pred_check
      _
    $region11: #{tpu_custom_call.1} parent=1 // pred_check_branch
      %33 = sbr.rel (0) target = $region13
    $region12: #{tpu_custom_call.1} parent=1 // pred_region
      %35 = dma.done [#allocation5], 256
    $region13: #{tpu_custom_call.1} parent=1 // pred_fallthru
      _
    // Predicated region
    $region14: #{tpu_custom_call.1} parent=1 // pred_check
      _
    $region15: #{tpu_custom_call.1} parent=1 // pred_check_branch
      %37 = sbr.rel (0) target = $region17
    $region16: #{tpu_custom_call.1} parent=1 // pred_region
      %39 = dma.done [#allocation8], 256
    $region17: #{tpu_custom_call.1} parent=1 // pred_fallthru
      _
    %p40 = scmp.eq.s32.totalorder 0, 0
    // Predicated region
    $region18: #{tpu_custom_call.1} parent=1 // pred_check
      %p41 = pneg %p40
    $region19: #{tpu_custom_call.1} parent=1 // pred_check_branch
      %43 = sbr.rel (%p41) target = $region21
    $region20: #{tpu_custom_call.1} parent=1 // pred_region
      %vm44 = vcmask 7168
      %45 = vst.msk [vmem:[#allocation2] sm:$0xff] %vm44, 0.0
      %46 = vst.msk [vmem:[#allocation3] sm:$0xff] %vm44, 0.0
    $region21: #{tpu_custom_call.1} parent=1 // pred_fallthru
      _
    %v47 = vld [vmem:[#allocation4] sm:$0xff]
    %v48 = vld [vmem:[#allocation4 + $0x8] sm:$0xff]
    %v49 = vmul.f32 %v47, 0.5
    %v50 = vmul.f32 %v48, 0.5
    %v51 = vtanh.pop %v49
    %v52 = vtanh.pop %v50
    %v53 = vmul.f32 %v51, 0.5
    %v54 = vmul.f32 %v52, 0.5
    %v55 = vadd.f32 %v53, 0.5
    %v56 = vadd.f32 %v54, 0.5
    %v57 = vld [vmem:[#allocation7] sm:$0xff]
    %v58 = vld [vmem:[#allocation7 + $0x8] sm:$0xff]
    %v59 = vld [vmem:[#allocation2] sm:$0xff]
    %v60 = vmul.f32 %v55, %v57
    %v61 = vmul.f32 %v56, %v58
    %v62 = vadd.f32 %v60, %v61
    %63 = vadd.xlane.f32.xlu0 %v62
    %v64 = vpop.xlane.xlu0 %63
    %v65 = vadd.f32 %v59, %v64
    %vm66 = vcmask 7168
    %67 = vst.msk [vmem:[#allocation2] sm:$0xff] %vm66, %v65
    %v68 = vld [vmem:[#allocation3] sm:$0xff]
    %v69 = vadd.f32 %v55, %v57
    %v70 = vadd.f32 %v56, %v58
    %v71 = vadd.f32 %v69, %v70
    %72 = vadd.xlane.f32.xlu0 %v71
    %v73 = vpop.xlane.xlu0 %72
    %v74 = vadd.f32 %v68, %v73
    %75 = vst.msk [vmem:[#allocation3] sm:$0xff] %vm66, %v74
    // Predicated region
    $region22: #{tpu_custom_call.1} parent=1 // pred_check
      %p76 = pneg %p40
    $region23: #{tpu_custom_call.1} parent=1 // pred_check_branch
      %78 = sbr.rel (%p76) target = $region25
    $region24: #{tpu_custom_call.1} parent=1 // pred_region
      %v79 = vld [vmem:[#allocation2] sm:$0xff]
      %v80 = vld [vmem:[#allocation3] sm:$0xff]
      %v81 = vsub.f32 %v80, %v79
      %v82 = vrcp.pop %v81
      %v83 = vmul.f32 %v81, %v82
      %v84 = vsub.f32 1.0, %v83
      %v85 = vmul.f32 %v82, %v84
      %v86 = vadd.f32 %v82, %v85
      %vm87 = vweird.f32 %v81
      %vm88 = vweird.f32 %v82
      %vm89 = vmor %vm87, %vm88
      %v90 = vsel %vm89, %v82, %v86
      %v91 = vand.u32 2147483647, %v81
      %vm92 = vcmp.eq.f32.partialorder %v91, 8.507059e+37
      %v93 = vand.u32 %v81, 2147483648
      %v94 = vor.u32 1.1754944e-38, %v93
      %v95 = vsel %vm92, %v94, %v90
      %v96 = vmul.f32 %v79, %v95
      %v97 = vsub.f32 1.0, %v96
      %v98 = vsel %vm66, %v97, 0.0
      %99 = vadd.xlane.f32.xlu0 %v98
      %v100 = vpop.xlane.xlu0 %99
      %v101 = vrot.slane %v100, 4
      %v102 = vadd.f32 %v100, %v101
      %v103 = vrot.slane %v102, 2
      %v104 = vadd.f32 %v102, %v103
      %v105 = vrot.slane %v104, 1
      %v106 = vadd.f32 %v104, %v105
      %s107 = vtos %v106
      %v108 = vstv %s107
      %109 = vst [vmem:[#allocation9] sm:$0xff] %v108
    $region25: #{tpu_custom_call.1} parent=1 // pred_fallthru
      _
    // Predicated region
    $region26: #{tpu_custom_call.1} parent=1 // pred_check
      _
    $region27: #{tpu_custom_call.1} parent=1 // pred_check_branch
      %111 = sbr.rel (0) target = $region29
    $region28: #{tpu_custom_call.1} parent=1 // pred_region
      %113 = vsyncadd [#allocation6], 0
      %s115 = sshll.u32 [#allocation9], 4
      %s116 = int_to_ptr.vmem [resolvable:$true] %s115
      %s117 = sshll.u32 %s2, 4
      %s118 = int_to_ptr.hbm [resolvable:$true] %s117
      %120 = dma.vmem_to_hbm [thread:$0]  %s116, 128, %s118, [#allocation6]
    $region29: #{tpu_custom_call.1} parent=1 // pred_fallthru
      _
    // Predicated region
    $region30: #{tpu_custom_call.1} parent=1 // pred_check
      _
    $region31: #{tpu_custom_call.1} parent=1 // pred_check_branch
      %122 = sbr.rel (0) target = $region33
    $region32: #{tpu_custom_call.1} parent=1 // pred_region
      %124 = dma.done [#allocation6], 128
    $region33: #{tpu_custom_call.1} parent=1 // pred_fallthru
      _
    %125 = vsyncpa [#allocation5], 1
    %126 = vsyncpa [#allocation8], 1
    %127 = vsyncpa [#allocation6], 1

</llo_original>
